<compile_context>
chip_gen: v7x
topology: tpu7x:2x2x1
jax: 0.10.0
libtpu: 0.0.40
codegen_flags: <defaults>
</compile_context>

<pallas_src>
import numpy as np
import jax
import jax.numpy as jnp
from jax.experimental import pallas as pl
from jax.experimental.pallas import tpu as pltpu

NUM_JOINTS = 24
# Standard SMPL kinematic-tree parents (entry 0 is the root; its parent is unused).
KINTREE_PARENTS = [-1, 0, 0, 0, 1, 2, 3, 4, 5, 6, 7, 8, 9, 9, 9,
                   12, 13, 14, 16, 17, 18, 19, 20, 21]


# ----------------------------------------------------------------------------
# Plain-JAX glue: axis-angle -> rotmat, 4x4 helpers
# ----------------------------------------------------------------------------
def batch_rodrigues(axisang):
    # axisang: (M, 3) -> (M, 3, 3); mirrors manopth's batch_rodrigues semantics.
    angle = jnp.linalg.norm(axisang + 1e-8, axis=1, keepdims=True)          # (M,1)
    axis = axisang / angle                                                  # (M,3)
    s = jnp.sin(angle)[..., None]                                           # (M,1,1)
    c = jnp.cos(angle)[..., None]
    x, y, z = axis[:, 0], axis[:, 1], axis[:, 2]
    zeros = jnp.zeros_like(x)
    K = jnp.stack([zeros, -z, y,
                   z, zeros, -x,
                   -y, x, zeros], axis=1).reshape(-1, 3, 3)
    eye = jnp.eye(3, dtype=axisang.dtype)[None]
    return eye + s * K + (1.0 - c) * jnp.matmul(K, K)


def posemap_axisang(pose):
    # (B, 72) -> (B, 24*9) flattened rotation matrices (th_posemap_axisang)
    b = pose.shape[0]
    rots = batch_rodrigues(pose.reshape(b * NUM_JOINTS, 3))
    return rots.reshape(b, NUM_JOINTS * 9)


def th_with_zeros(x):
    # (B, 3, 4) -> (B, 4, 4) appending row [0, 0, 0, 1]
    b = x.shape[0]
    row = jnp.tile(jnp.array([[[0.0, 0.0, 0.0, 1.0]]], dtype=x.dtype), (b, 1, 1))
    return jnp.concatenate([x, row], axis=1)


# ----------------------------------------------------------------------------
# Pallas kernel: per-point transform blend + affine apply + translation
# ----------------------------------------------------------------------------
def _skin_kernel(a_ref, w_ref, pts_ref, trans_ref, out_ref):
    # a_ref:     (1, 12, 24) VMEM  top-3 rows of per-joint transforms, flat = 4*r + c
    # w_ref:     (1, 24, TN) VMEM  skinning weights tile
    # pts_ref:   (1, 3,  TN) VMEM  rest points tile
    # trans_ref: (B, 3)      SMEM  global translations (whole array, scalar reads)
    # out_ref:   (1, 3,  TN) VMEM  posed points tile
    bi = pl.program_id(0)
    A = a_ref[0]                                               # (12, 24)
    W = w_ref[0]                                               # (24, TN)
    T = jnp.dot(A, W, preferred_element_type=jnp.float32)      # (12, TN) blended 3x4
    P = pts_ref[0]                                             # (3, TN)
    x = P[0:1, :]
    y = P[1:2, :]
    z = P[2:3, :]
    for r in range(3):                                         # static unroll
        row = (T[4 * r + 0:4 * r + 1, :] * x
               + T[4 * r + 1:4 * r + 2, :] * y
               + T[4 * r + 2:4 * r + 3, :] * z
               + T[4 * r + 3:4 * r + 4, :]                     # homogeneous '1' term
               + trans_ref[bi, r])                             # SMEM scalar
        out_ref[0, r:r + 1, :] = row.astype(out_ref.dtype)     # direct per-row store


def skin_points_pallas(th_results2, skinning_weights, points, trans, *, tile_n=None):
    b, _, n = points.shape
    assert n % 128 == 0, "N must be a multiple of 128 (pad points/weights if needed)"
    if tile_n is None:
        # Big lane tiles amortize the ~0.35us/step pipeline overhead; even at 4096
        # lanes the double-buffered working set is ~2 MiB, far under scoped VMEM on
        # v5e/v6e/v7x.
        tile_n = min(n, 4096)
        if b == 1:
            # Keep at least two grid tiles alive so both TensorCores on a v7x chip
            # get work.
            tile_n = min(tile_n, max(128, (n // 2) // 128 * 128))
        while n % tile_n:
            tile_n -= 128
    assert tile_n % 128 == 0 and n % tile_n == 0

    # Only the top 3 rows of each blended 4x4 matter (bottom row is [0,0,0,1]).
    A = th_results2[:, :3, :, :].reshape(b, 12, NUM_JOINTS).astype(jnp.float32)
    trans2 = trans.reshape(b, 3).astype(jnp.float32)

    return pl.pallas_call(
        _skin_kernel,
        out_shape=jax.ShapeDtypeStruct((b, 3, n), points.dtype),
        grid_spec=pltpu.PrefetchScalarGridSpec(
            num_scalar_prefetch=0,
            grid=(b, n // tile_n),
            in_specs=[
                pl.BlockSpec((1, 12, NUM_JOINTS), lambda i, j: (i, 0, 0)),
                pl.BlockSpec((1, NUM_JOINTS, tile_n), lambda i, j: (i, 0, j)),
                pl.BlockSpec((1, 3, tile_n), lambda i, j: (i, 0, j)),
                pl.BlockSpec(memory_space=pltpu.MemorySpace.SMEM),   # trans (B,3)
            ],
            out_specs=pl.BlockSpec((1, 3, tile_n), lambda i, j: (i, 0, j)),
        ),
        compiler_params=pltpu.CompilerParams(
            dimension_semantics=("parallel", "parallel")),
    )(A, skinning_weights, points, trans2)


# ----------------------------------------------------------------------------
# Model
# ----------------------------------------------------------------------------
class SkinModelPallas:
    """JAX/Pallas re-implementation of SkinModel.

    Parameters (v_template, J_regressor) are synthesized deterministically since
    the original module loads them from the SMPL pickle.
    """

    def __init__(self, num_verts=64, key=None):
        if key is None:
            key = jax.random.PRNGKey(0)
        k1, k2 = jax.random.split(key)
        # th_v_template: (1, V, 3); th_J_regressor: (24, V) (rows sum to 1 like SMPL)
        self.th_v_template = jax.random.normal(k1, (1, num_verts, 3), jnp.float32)
        self.th_J_regressor = jax.nn.softmax(
            jax.random.normal(k2, (NUM_JOINTS, num_verts), jnp.float32), axis=-1)
        self.kintree_parents = KINTREE_PARENTS
        self.num_joints = NUM_JOINTS

        # Depth-group the kinematic tree once: FK becomes max_depth (=8) batched
        # 4x4 matmuls instead of 23 sequential tiny matmuls (cheaper dispatch).
        depths = [0] * NUM_JOINTS
        for i in range(1, NUM_JOINTS):
            depths[i] = depths[KINTREE_PARENTS[i]] + 1
        self._depth_groups = []
        for d in range(1, max(depths) + 1):
            ch = np.array([i for i in range(NUM_JOINTS) if depths[i] == d], np.int32)
            pa = np.array([KINTREE_PARENTS[int(i)] for i in ch], np.int32)
            self._depth_groups.append((ch, pa))

    def compute_smpl_skeleton(self, pose):
        # pose: (B, 72) -> th_results2: (B, 4, 4, 24); same math as the PyTorch loops.
        b = pose.shape[0]
        dtype = pose.dtype
        rotmats = batch_rodrigues(
            pose.reshape(b * NUM_JOINTS, 3)).reshape(b, NUM_JOINTS, 3, 3)
        th_v = jnp.broadcast_to(self.th_v_template,
                                (b,) + self.th_v_template.shape[1:])
        th_j = jnp.einsum('jv,bvd->bjd', self.th_J_regressor, th_v)     # (B,24,3)

        parent_idx = np.array(self.kintree_parents, np.int32)
        parent_idx0 = parent_idx.copy()
        parent_idx0[0] = 0
        offs = th_j - th_j[:, parent_idx0]               # (B,24,3); root offset == 0
        offs = offs.at[:, 0].set(th_j[:, 0])             # root carries absolute joint

        top = jnp.concatenate([rotmats, offs[..., None]], axis=-1)      # (B,24,3,4)
        bottom = jnp.broadcast_to(
            jnp.array([0.0, 0.0, 0.0, 1.0], dtype), (b, NUM_JOINTS, 1, 4))
        results = jnp.concatenate([top, bottom], axis=-2)               # (B,24,4,4)

        # Depth-grouped forward kinematics (parents are always at depth d-1).
        for ch, pa in self._depth_groups:
            results = results.at[:, ch].set(
                jnp.matmul(results[:, pa], results[:, ch]))

        # th_pack: subtract (global transform applied to rest joint) from the
        # translation column only.
        j_h = jnp.concatenate(
            [th_j, jnp.zeros((b, NUM_JOINTS, 1), th_j.dtype)], axis=-1)  # (B,24,4)
        tmp = jnp.einsum('bjrc,bjc->bjr', results, j_h)                  # (B,24,4)
        res2 = results.at[:, :, :, 3].add(-tmp)
        return jnp.transpose(res2, (0, 2, 3, 1))                          # (B,4,4,24)

    def __call__(self, points, pose, skinning_weights, trans=None):
        b = pose.shape[0]
        if trans is None:
            trans = jnp.zeros((b, 3), dtype=points.dtype)
        th_results2 = self.compute_smpl_skeleton(pose)
        p_verts = skin_points_pallas(th_results2, skinning_weights, points, trans)
        return {'posed_cloth_points': p_verts}


# ----------------------------------------------------------------------------
# Pure-JAX reference: a direct port of the PyTorch forward (loop-based FK),
# independent of both the vectorized skeleton and the Pallas kernel.
# ----------------------------------------------------------------------------
def reference_forward(model, points, pose, skinning_weights, trans):
    b = pose.shape[0]
    rotmat = posemap_axisang(pose)                        # (B, 216)
    root_rot = rotmat[:, :9].reshape(b, 3, 3)
    joint_rots = rotmat[:, 9:]
    th_v = jnp.tile(model.th_v_template, (b, 1, 1))
    th_j = jnp.einsum('jv,bvd->bjd', model.th_J_regressor, th_v)
    results = [th_with_zeros(jnp.concatenate(
        [root_rot, th_j[:, 0].reshape(b, 3, 1)], axis=2))]
    for i in range(1, NUM_JOINTS):
        rot = joint_rots[:, (i - 1) * 9:i * 9].reshape(b, 3, 3)
        j = th_j[:, i].reshape(b, 3, 1)
        pj = th_j[:, model.kintree_parents[i]].reshape(b, 3, 1)
        rel = th_with_zeros(jnp.concatenate([rot, j - pj], axis=2))
        results.append(jnp.matmul(results[model.kintree_parents[i]], rel))
    res2 = []
    for i in range(NUM_JOINTS):
        jh = jnp.concatenate(
            [th_j[:, i], jnp.zeros((b, 1), th_j.dtype)], axis=1)          # (B,4)
        tmp = jnp.matmul(results[i], jh[:, :, None])                       # (B,4,1)
        packed = jnp.concatenate(
            [jnp.zeros((b, 4, 3), tmp.dtype), tmp], axis=2)                # th_pack
        res2.append(results[i] - packed)
    th2 = jnp.stack(res2, axis=-1)                                         # (B,4,4,24)
    p_T = jnp.matmul(th2.reshape(b, 16, NUM_JOINTS),
                     skinning_weights).reshape(b, 4, 4, -1)
    ones = jnp.ones((b, 1, points.shape[2]), points.dtype)
    rest = jnp.concatenate([points, ones], axis=1)
    verts = (p_T * rest[:, None, :, :]).sum(2)
    return verts[:, :3, :] + trans[..., None]


if __name__ == "__main__":
    B, N, V = 2, 256, 64
    key = jax.random.PRNGKey(0)
    k_model, k_pts, k_pose, k_w = jax.random.split(key, 4)

    model = SkinModelPallas(num_verts=V, key=k_model)

    points = jax.random.normal(k_pts, (B, 3, N), jnp.float32)
    pose = 0.2 * jax.random.normal(k_pose, (B, 72), jnp.float32)
    skinning_weights = jax.nn.softmax(
        jax.random.normal(k_w, (B, NUM_JOINTS, N), jnp.float32), axis=1)

    @jax.jit
    def forward(points, pose, skinning_weights):
        return model(points, pose, skinning_weights,
                     trans=None)['posed_cloth_points']

    posed = jax.block_until_ready(forward(points, pose, skinning_weights))
    assert posed.shape == (B, 3, N)

    ref = jax.block_until_ready(
        reference_forward(model, points, pose, skinning_weights,
                          jnp.zeros((B, 3), jnp.float32)))
    np.testing.assert_allclose(np.asarray(posed), np.asarray(ref),
                               rtol=1e-3, atol=1e-3)

    print("KERNEL_OK")
</pallas_src>

<mosaic_0001>
module attributes {stable_mosaic.version = 11 : i64} {
  func.func @_skin_kernel(%arg0: i32, %arg1: i32, %arg2: memref<1x12x24xf32, #tpu.memory_space<vmem>>, %arg3: memref<1x24x256xf32, #tpu.memory_space<vmem>>, %arg4: memref<1x3x256xf32, #tpu.memory_space<vmem>>, %arg5: memref<2x3xf32, #tpu.memory_space<smem>>, %arg6: memref<1x3x256xf32, #tpu.memory_space<vmem>>) attributes {dimension_semantics = [#tpu.dimension_semantics<parallel>, #tpu.dimension_semantics<parallel>], iteration_bounds = array<i64: 2, 1>, scalar_prefetch = 0 : i64, scratch_operands = 0 : i64, tpu.core_type = #tpu.core_type<tc>, window_params = [{transform_indices = @transform_0, window_bounds = array<i64: 1, 12, 24>}, {transform_indices = @transform_1, window_bounds = array<i64: 1, 24, 256>}, {transform_indices = @transform_2, window_bounds = array<i64: 1, 3, 256>}, {transform_indices = @transform_3, window_bounds = array<i64: 2, 3>}, {transform_indices = @transform_4, window_bounds = array<i64: 1, 3, 256>}]} {
    %c0 = arith.constant 0 : index
    %c0_0 = arith.constant 0 : index
    %c0_1 = arith.constant 0 : index
    %0 = vector.load %arg2[%c0, %c0_0, %c0_1] : memref<1x12x24xf32, #tpu.memory_space<vmem>>, vector<1x12x24xf32>
    %1 = vector.shape_cast %0 : vector<1x12x24xf32> to vector<12x24xf32>
    %c0_2 = arith.constant 0 : index
    %c0_3 = arith.constant 0 : index
    %c0_4 = arith.constant 0 : index
    %2 = vector.load %arg3[%c0_2, %c0_3, %c0_4] : memref<1x24x256xf32, #tpu.memory_space<vmem>>, vector<1x24x256xf32>
    %3 = vector.shape_cast %2 : vector<1x24x256xf32> to vector<24x256xf32>
    %cst = arith.constant dense<0.000000e+00> : vector<12x256xf32>
    %4 = tpu.matmul %1, %3, %cst {dimension_numbers = #tpu.dot_dimension_numbers<[1], [0], [0], [1], [0, 0, 1, 1], [], []>} : vector<12x24xf32>, vector<24x256xf32>, vector<12x256xf32> -> vector<12x256xf32>
    %c0_5 = arith.constant 0 : index
    %c0_6 = arith.constant 0 : index
    %c0_7 = arith.constant 0 : index
    %5 = vector.load %arg4[%c0_5, %c0_6, %c0_7] : memref<1x3x256xf32, #tpu.memory_space<vmem>>, vector<1x3x256xf32>
    %6 = vector.shape_cast %5 : vector<1x3x256xf32> to vector<3x256xf32>
    %7 = vector.extract_strided_slice %6 {offsets = [0, 0], sizes = [1, 256], strides = [1, 1]} : vector<3x256xf32> to vector<1x256xf32>
    %8 = vector.extract_strided_slice %6 {offsets = [1, 0], sizes = [1, 256], strides = [1, 1]} : vector<3x256xf32> to vector<1x256xf32>
    %9 = vector.extract_strided_slice %6 {offsets = [2, 0], sizes = [1, 256], strides = [1, 1]} : vector<3x256xf32> to vector<1x256xf32>
    %10 = vector.extract_strided_slice %4 {offsets = [0, 0], sizes = [1, 256], strides = [1, 1]} : vector<12x256xf32> to vector<1x256xf32>
    %11 = arith.mulf %10, %7 : vector<1x256xf32>
    %12 = vector.extract_strided_slice %4 {offsets = [1, 0], sizes = [1, 256], strides = [1, 1]} : vector<12x256xf32> to vector<1x256xf32>
    %13 = arith.mulf %12, %8 : vector<1x256xf32>
    %14 = arith.addf %11, %13 : vector<1x256xf32>
    %15 = vector.extract_strided_slice %4 {offsets = [2, 0], sizes = [1, 256], strides = [1, 1]} : vector<12x256xf32> to vector<1x256xf32>
    %16 = arith.mulf %15, %9 : vector<1x256xf32>
    %17 = arith.addf %14, %16 : vector<1x256xf32>
    %18 = vector.extract_strided_slice %4 {offsets = [3, 0], sizes = [1, 256], strides = [1, 1]} : vector<12x256xf32> to vector<1x256xf32>
    %19 = arith.addf %17, %18 : vector<1x256xf32>
    %20 = arith.index_cast %arg0 : i32 to index
    %c0_8 = arith.constant 0 : index
    %21 = memref.load %arg5[%20, %c0_8] : memref<2x3xf32, #tpu.memory_space<smem>>
    %22 = vector.broadcast %21 : f32 to vector<1x256xf32>
    %23 = arith.addf %19, %22 : vector<1x256xf32>
    %c0_9 = arith.constant 0 : index
    %c0_10 = arith.constant 0 : index
    %c0_11 = arith.constant 0 : index
    %24 = vector.load %arg6[%c0_9, %c0_10, %c0_11] : memref<1x3x256xf32, #tpu.memory_space<vmem>>, vector<1x1x256xf32>
    %25 = vector.shape_cast %24 : vector<1x1x256xf32> to vector<1x256xf32>
    %26 = vector.shape_cast %23 : vector<1x256xf32> to vector<1x1x256xf32>
    tpu.vector_store %arg6[%c0_9, %c0_10, %c0_11], %26 {strides = array<i32>} : memref<1x3x256xf32, #tpu.memory_space<vmem>>, vector<1x1x256xf32>,
    %27 = vector.extract_strided_slice %4 {offsets = [4, 0], sizes = [1, 256], strides = [1, 1]} : vector<12x256xf32> to vector<1x256xf32>
    %28 = arith.mulf %27, %7 : vector<1x256xf32>
    %29 = vector.extract_strided_slice %4 {offsets = [5, 0], sizes = [1, 256], strides = [1, 1]} : vector<12x256xf32> to vector<1x256xf32>
    %30 = arith.mulf %29, %8 : vector<1x256xf32>
    %31 = arith.addf %28, %30 : vector<1x256xf32>
    %32 = vector.extract_strided_slice %4 {offsets = [6, 0], sizes = [1, 256], strides = [1, 1]} : vector<12x256xf32> to vector<1x256xf32>
    %33 = arith.mulf %32, %9 : vector<1x256xf32>
    %34 = arith.addf %31, %33 : vector<1x256xf32>
    %35 = vector.extract_strided_slice %4 {offsets = [7, 0], sizes = [1, 256], strides = [1, 1]} : vector<12x256xf32> to vector<1x256xf32>
    %36 = arith.addf %34, %35 : vector<1x256xf32>
    %37 = arith.index_cast %arg0 : i32 to index
    %c1 = arith.constant 1 : index
    %38 = memref.load %arg5[%37, %c1] : memref<2x3xf32, #tpu.memory_space<smem>>
    %39 = vector.broadcast %38 : f32 to vector<1x256xf32>
    %40 = arith.addf %36, %39 : vector<1x256xf32>
    %c0_12 = arith.constant 0 : index
    %c1_13 = arith.constant 1 : index
    %c0_14 = arith.constant 0 : index
    %41 = vector.load %arg6[%c0_12, %c1_13, %c0_14] : memref<1x3x256xf32, #tpu.memory_space<vmem>>, vector<1x1x256xf32>
    %42 = vector.shape_cast %41 : vector<1x1x256xf32> to vector<1x256xf32>
    %43 = vector.shape_cast %40 : vector<1x256xf32> to vector<1x1x256xf32>
    tpu.vector_store %arg6[%c0_12, %c1_13, %c0_14], %43 {strides = array<i32>} : memref<1x3x256xf32, #tpu.memory_space<vmem>>, vector<1x1x256xf32>,
    %44 = vector.extract_strided_slice %4 {offsets = [8, 0], sizes = [1, 256], strides = [1, 1]} : vector<12x256xf32> to vector<1x256xf32>
    %45 = arith.mulf %44, %7 : vector<1x256xf32>
    %46 = vector.extract_strided_slice %4 {offsets = [9, 0], sizes = [1, 256], strides = [1, 1]} : vector<12x256xf32> to vector<1x256xf32>
    %47 = arith.mulf %46, %8 : vector<1x256xf32>
    %48 = arith.addf %45, %47 : vector<1x256xf32>
    %49 = vector.extract_strided_slice %4 {offsets = [10, 0], sizes = [1, 256], strides = [1, 1]} : vector<12x256xf32> to vector<1x256xf32>
    %50 = arith.mulf %49, %9 : vector<1x256xf32>
    %51 = arith.addf %48, %50 : vector<1x256xf32>
    %52 = vector.extract_strided_slice %4 {offsets = [11, 0], sizes = [1, 256], strides = [1, 1]} : vector<12x256xf32> to vector<1x256xf32>
    %53 = arith.addf %51, %52 : vector<1x256xf32>
    %54 = arith.index_cast %arg0 : i32 to index
    %c2 = arith.constant 2 : index
    %55 = memref.load %arg5[%54, %c2] : memref<2x3xf32, #tpu.memory_space<smem>>
    %56 = vector.broadcast %55 : f32 to vector<1x256xf32>
    %57 = arith.addf %53, %56 : vector<1x256xf32>
    %c0_15 = arith.constant 0 : index
    %c2_16 = arith.constant 2 : index
    %c0_17 = arith.constant 0 : index
    %58 = vector.load %arg6[%c0_15, %c2_16, %c0_17] : memref<1x3x256xf32, #tpu.memory_space<vmem>>, vector<1x1x256xf32>
    %59 = vector.shape_cast %58 : vector<1x1x256xf32> to vector<1x256xf32>
    %60 = vector.shape_cast %57 : vector<1x256xf32> to vector<1x1x256xf32>
    tpu.vector_store %arg6[%c0_15, %c2_16, %c0_17], %60 {strides = array<i32>} : memref<1x3x256xf32, #tpu.memory_space<vmem>>, vector<1x1x256xf32>,
    return
  }
  func.func @transform_0(%arg0: i32, %arg1: i32) -> (i32, i32, i32) {
    %c0_i32 = arith.constant 0 : i32
    %c0_i32_0 = arith.constant 0 : i32
    %c0_i32_1 = arith.constant 0 : i32
    return %arg0, %c0_i32, %c0_i32_0 : i32, i32, i32
  }
  func.func @transform_1(%arg0: i32, %arg1: i32) -> (i32, i32, i32) {
    %c0_i32 = arith.constant 0 : i32
    %c0_i32_0 = arith.constant 0 : i32
    return %arg0, %c0_i32, %arg1 : i32, i32, i32
  }
  func.func @transform_2(%arg0: i32, %arg1: i32) -> (i32, i32, i32) {
    %c0_i32 = arith.constant 0 : i32
    %c0_i32_0 = arith.constant 0 : i32
    return %arg0, %c0_i32, %arg1 : i32, i32, i32
  }
  func.func @transform_3(%arg0: i32, %arg1: i32) -> (i32, i32) {
    %c0_i32 = arith.constant 0 : i32
    %c0_i32_0 = arith.constant 0 : i32
    %c0_i32_1 = arith.constant 0 : i32
    return %c0_i32, %c0_i32_0 : i32, i32
  }
  func.func @transform_4(%arg0: i32, %arg1: i32) -> (i32, i32, i32) {
    %c0_i32 = arith.constant 0 : i32
    %c0_i32_0 = arith.constant 0 : i32
    return %arg0, %c0_i32, %arg1 : i32, i32, i32
  }
}

</mosaic_0001>

<llo_original>
// kernel: forward.1
$region0: #{forward.1}
  #allocation0 [shape = 'u32[]', space=smem, size = 0x4, offset = 0x4, fixed_abs, tag = 'smem constant byte address 0x4 - core index']
  #allocation1 [shape = 'u32[144,128]{1,0:T(1,128)}', space=vmem, size = 0x12000, scoped, tag = 'internal scratch']
  %s0 = inlined_call_operand.vmem [shape: f32[2,12,24], index: 0, kind: input, shape index: {}]
  %s1 = inlined_call_operand.vmem [shape: f32[2,24,256], index: 1, kind: input, shape index: {}]
  %s2 = inlined_call_operand.vmem [shape: f32[2,3,256], index: 2, kind: input, shape index: {}]
  %s3 = inlined_call_operand.vmem [shape: f32[2,3], index: 3, kind: input, shape index: {}]
  %s4 = inlined_call_operand.vmem [shape: f32[2,3,256], index: 4, kind: output, shape index: {}]
  %s5 = sld [smem:[#allocation0]]
  $region53: #{forward.1} parent=0
    _
  %s7 = ssub.s32 1, %s5
  %s8 = scalar_select 0, %s7, %s5
  $region1: #{forward.1} parent=0
    #allocation2 [shape = 'u8[1024]{0}', space=smem, size = 0x400, scoped, tag = 'input window, operand 3, single buffered']
    #allocation3 [shape = 's32[2]{0}', space=sflag, size = 0x8, scoped, tag = 'scoped memory for forward.1']
    %9 = vsyncpa [#allocation3], 0
    loop: start=0, step=1, limit=4
    $region2: #{forward.1} parent=1 // loop_pre_header
      _
    $region3: #{forward.1} parent=1 // loop_header
      %s11 = sphi 0, %s15
      %p12 = scmp.ge.s32.totalorder %s11, 4
      %s18 = sphi 0, %s30
      %s19 = sphi 0, %s26
      %s20 = sphi 0, %s18
      %s21 = sphi 0, %s19
      %s22 = sphi 0, %s20
      %s23 = sphi 0, %s21
      %s33 = sphi 0, %s35
      %s36 = sphi 0, %s33
      %s37 = sphi 0, %s36
      %s53 = sphi 0, %s37
      %s61 = sphi 0, %s63
      %s64 = sphi 0, %s61
      %s65 = sphi 0, %s64
      %s81 = sphi 0, %s65
      %s89 = sphi 0, %s91
      %s92 = sphi 0, %s89
      %s93 = sphi 0, %s92
      %s109 = sphi 0, %s93
      %s113 = sphi 0, %s113
      %s115 = sphi 0, %s113
      %s116 = sphi 0, %s115
      %s130 = sphi 0, %s116
      %s138 = sphi 0, %s140
      %s141 = sphi 0, %s138
      %s142 = sphi 0, %s141
      %s158 = sphi 0, %s142
    $region4: #{forward.1} parent=1 // loop_header_branch
      %14 = sbr.rel (%p12) target = $region8
    $region5: #{forward.1} parent=1 // loop_body
      %s16 = ssub.s32 %s11, 1
      %s17 = ssub.s32 %s11, 2
      %s24 = sadd.s32 1, %s19
      %p25 = scmp.ge.s32.totalorder %s24, 1
      %s26 = scalar_select %p25, 0, %s24
      %s27 = sadd.s32 1, %s18
      %s28 = scalar_select %p25, %s27, %s18
      %p29 = scmp.ge.s32.totalorder %s28, 2
      %s30 = scalar_select %p29, 0, %s28
      %s31 = ssub.s32 %s18, %s30
      %p32 = scmp.eq.s32.totalorder %s31, 0
      %s34 = sadd.s32 %s33, 1
      %s35 = scalar_select %p32, %s33, %s34
      %p38 = pneg %p32
      %p39 = scmp.eq.s32.totalorder %s11, 1
      %p40 = por %p38, %p39
      %p41 = scmp.ne.s32.totalorder %s33, %s36
      %p42 = scmp.eq.s32.totalorder %s11, 0
      %p43 = por %p41, %p42
      %p44 = scmp.ne.s32.totalorder %s33, %s36
      %p45 = scmp.eq.s32.totalorder %s16, 1
      %p46 = por %p44, %p45
      %p47 = scmp.ne.s32.totalorder %s36, %s37
      %p48 = scmp.eq.s32.totalorder %s16, 0
      %p49 = por %p47, %p48
      %p50 = scmp.ne.s32.totalorder %s36, %s37
      %p51 = scmp.eq.s32.totalorder %s17, 1
      %p52 = por %p50, %p51
      %p54 = scmp.ne.s32.totalorder %s37, %s53
      %p55 = scmp.eq.s32.totalorder %s17, 0
      %p56 = por %p54, %p55
      %s57 = ssub.s32 %s18, %s30
      %s58 = ssub.s32 %s19, %s26
      %s59 = sor.u32 %s57, %s58
      %p60 = scmp.eq.s32.totalorder %s59, 0
      %s62 = sadd.s32 %s61, 1
      %s63 = scalar_select %p60, %s61, %s62
      %p66 = pneg %p60
      %p67 = scmp.eq.s32.totalorder %s11, 1
      %p68 = por %p66, %p67
      %p69 = scmp.ne.s32.totalorder %s61, %s64
      %p70 = scmp.eq.s32.totalorder %s11, 0
      %p71 = por %p69, %p70
      %p72 = scmp.ne.s32.totalorder %s61, %s64
      %p73 = scmp.eq.s32.totalorder %s16, 1
      %p74 = por %p72, %p73
      %p75 = scmp.ne.s32.totalorder %s64, %s65
      %p76 = scmp.eq.s32.totalorder %s16, 0
      %p77 = por %p75, %p76
      %p78 = scmp.ne.s32.totalorder %s64, %s65
      %p79 = scmp.eq.s32.totalorder %s17, 1
      %p80 = por %p78, %p79
      %p82 = scmp.ne.s32.totalorder %s65, %s81
      %p83 = scmp.eq.s32.totalorder %s17, 0
      %p84 = por %p82, %p83
      %s85 = ssub.s32 %s18, %s30
      %s86 = ssub.s32 %s19, %s26
      %s87 = sor.u32 %s85, %s86
      %p88 = scmp.eq.s32.totalorder %s87, 0
      %s90 = sadd.s32 %s89, 1
      %s91 = scalar_select %p88, %s89, %s90
      %p94 = pneg %p88
      %p95 = scmp.eq.s32.totalorder %s11, 1
      %p96 = por %p94, %p95
      %p97 = scmp.ne.s32.totalorder %s89, %s92
      %p98 = scmp.eq.s32.totalorder %s11, 0
      %p99 = por %p97, %p98
      %p100 = scmp.ne.s32.totalorder %s89, %s92
      %p101 = scmp.eq.s32.totalorder %s16, 1
      %p102 = por %p100, %p101
      %p103 = scmp.ne.s32.totalorder %s92, %s93
      %p104 = scmp.eq.s32.totalorder %s16, 0
      %p105 = por %p103, %p104
      %p106 = scmp.ne.s32.totalorder %s92, %s93
      %p107 = scmp.eq.s32.totalorder %s17, 1
      %p108 = por %p106, %p107
      %p110 = scmp.ne.s32.totalorder %s93, %s109
      %p111 = scmp.eq.s32.totalorder %s17, 0
      %p112 = por %p110, %p111
      %s114 = sadd.s32 %s113, 1
      %p117 = scmp.eq.s32.totalorder %s11, 1
      %p118 = scmp.ne.s32.totalorder %s113, %s115
      %p119 = scmp.eq.s32.totalorder %s11, 0
      %p120 = por %p118, %p119
      %p121 = scmp.ne.s32.totalorder %s113, %s115
      %p122 = scmp.eq.s32.totalorder %s16, 1
      %p123 = por %p121, %p122
      %p124 = scmp.ne.s32.totalorder %s115, %s116
      %p125 = scmp.eq.s32.totalorder %s16, 0
      %p126 = por %p124, %p125
      %p127 = scmp.ne.s32.totalorder %s115, %s116
      %p128 = scmp.eq.s32.totalorder %s17, 1
      %p129 = por %p127, %p128
      %p131 = scmp.ne.s32.totalorder %s116, %s130
      %p132 = scmp.eq.s32.totalorder %s17, 0
      %p133 = por %p131, %p132
      %s134 = ssub.s32 %s18, %s30
      %s135 = ssub.s32 %s19, %s26
      %s136 = sor.u32 %s134, %s135
      %p137 = scmp.eq.s32.totalorder %s136, 0
      %s139 = sadd.s32 %s138, 1
      %s140 = scalar_select %p137, %s138, %s139
      %p143 = pneg %p137
      %p144 = scmp.eq.s32.totalorder %s11, 1
      %p145 = por %p143, %p144
      %p146 = scmp.ne.s32.totalorder %s138, %s141
      %p147 = scmp.eq.s32.totalorder %s11, 0
      %p148 = por %p146, %p147
      %p149 = scmp.ne.s32.totalorder %s138, %s141
      %p150 = scmp.eq.s32.totalorder %s16, 1
      %p151 = por %p149, %p150
      %p152 = scmp.ne.s32.totalorder %s141, %s142
      %p153 = scmp.eq.s32.totalorder %s16, 0
      %p154 = por %p152, %p153
      %p155 = scmp.ne.s32.totalorder %s141, %s142
      %p156 = scmp.eq.s32.totalorder %s17, 1
      %p157 = por %p155, %p156
      %p159 = scmp.ne.s32.totalorder %s142, %s158
      %p160 = scmp.eq.s32.totalorder %s17, 0
      %p161 = por %p159, %p160
      %p162 = scmp.le.s32.totalorder 1, %s11
      %p163 = scmp.lt.s32.totalorder %s11, 3
      %p164 = pnand %p162, %p163
      %p165 = pneg %p164
      // Predicated region
      $region9: #{forward.1} parent=5 // pred_check
        _
      $region10: #{forward.1} parent=5 // pred_check_branch
        %167 = sbr.rel (%p164) target = $region12
      $region11: #{forward.1} parent=5 // pred_region
        %s168 = ssub.s32 %s11, 1
        // Predicated region
        $region13: #{forward.1} parent=11 // pred_check
          %p169 = pneg %p126
        $region14: #{forward.1} parent=11 // pred_check_branch
          %171 = sbr.rel (%p169) target = $region16
        $region15: #{forward.1} parent=11 // pred_region
          %s173 = ssub.s32 32, 32
          %174 = vsyncadd [#allocation3], %s173
          %s176 = sshll.u32 %s3, 4
          %s177 = int_to_ptr.vmem [resolvable:$true] %s176
          %179 = dma.vmem_to_smem %s177, 32, [#allocation2], [#allocation3]
        $region16: #{forward.1} parent=11 // pred_fallthru
          _
      $region12: #{forward.1} parent=5 // pred_fallthru
        _
      %p180 = scmp.lt.s32.totalorder %s11, 2
      // Predicated region
      $region17: #{forward.1} parent=5 // pred_check
        %p181 = pneg %p180
      $region18: #{forward.1} parent=5 // pred_check_branch
        %183 = sbr.rel (%p181) target = $region20
      $region19: #{forward.1} parent=5 // pred_region
        // Predicated region
        $region21: #{forward.1} parent=19 // pred_check
          %p184 = pneg %p43
        $region22: #{forward.1} parent=19 // pred_check_branch
          %186 = sbr.rel (%p184) target = $region24
        $region23: #{forward.1} parent=19 // pred_region
          %p187 = scmp.lt.s32.totalorder %s18, 1
          %s188 = scalar_select %p187, %s18, 1
          %s189 = smul.addr %s188, 2
          %s190 = smul.addr %s189, 8
          %s191 = scalar_lea.vmem %s0, %s190
        $region24: #{forward.1} parent=19 // pred_fallthru
          _
        // Predicated region
        $region25: #{forward.1} parent=19 // pred_check
          %p192 = pneg %p71
        $region26: #{forward.1} parent=19 // pred_check_branch
          %194 = sbr.rel (%p192) target = $region28
        $region27: #{forward.1} parent=19 // pred_region
          %s195 = smul.u32 2, %s19
          %p196 = scmp.lt.s32.totalorder %s18, 1
          %s197 = scalar_select %p196, %s18, 1
          %p198 = scmp.lt.s32.totalorder %s195, 1
          %s199 = scalar_select %p198, %s195, 1
          %s200 = smul.addr %s197, 6
          %s201 = sadd.s32 %s199, %s200
          %s202 = smul.addr %s201, 8
          %s203 = scalar_lea.vmem %s1, %s202
          %s204 = smul.u32 2, %s19
        $region28: #{forward.1} parent=19 // pred_fallthru
          _
        // Predicated region
        $region29: #{forward.1} parent=19 // pred_check
          %p205 = pneg %p99
        $region30: #{forward.1} parent=19 // pred_check_branch
          %207 = sbr.rel (%p205) target = $region32
        $region31: #{forward.1} parent=19 // pred_region
          %s208 = smul.u32 2, %s19
          %p209 = scmp.lt.s32.totalorder %s18, 1
          %s210 = scalar_select %p209, %s18, 1
          %p211 = scmp.lt.s32.totalorder %s208, 1
          %s212 = scalar_select %p211, %s208, 1
          %s213 = smul.addr %s210, 2
          %s214 = sadd.s32 %s212, %s213
          %s215 = smul.addr %s214, 4
          %s216 = scalar_lea.vmem %s2, %s215
          %s217 = smul.u32 2, %s19
        $region32: #{forward.1} parent=19 // pred_fallthru
          _
      $region20: #{forward.1} parent=5 // pred_fallthru
        _
      %p218 = scmp.le.s32.totalorder 1, %s11
      %p219 = scmp.lt.s32.totalorder %s11, 3
      %p220 = pnand %p218, %p219
      %p221 = pneg %p220
      // Predicated region
      $region33: #{forward.1} parent=5 // pred_check
        _
      $region34: #{forward.1} parent=5 // pred_check_branch
        %223 = sbr.rel (%p220) target = $region36
      $region35: #{forward.1} parent=5 // pred_region
        %s224 = ssub.s32 %s11, 1
        // Predicated region
        $region37: #{forward.1} parent=35 // pred_check
          %p225 = pneg %p126
        $region38: #{forward.1} parent=35 // pred_check_branch
          %227 = sbr.rel (%p225) target = $region40
        $region39: #{forward.1} parent=35 // pred_region
          %228 = dma.done [#allocation3], 32
        $region40: #{forward.1} parent=35 // pred_fallthru
          _
        %229 = sfence
        %p230 = scmp.lt.s32.totalorder %s20, 1
        %s231 = scalar_select %p230, %s20, 1
        %s232 = smul.addr %s231, 2
        %s233 = smul.addr %s232, 8
        %s234 = scalar_lea.vmem %s0, %s233
        %p235 = pneg %p49
        %p236 = pneg %p46
        %s237 = smul.u32 2, %s21
        %p238 = scmp.lt.s32.totalorder %s20, 1
        %s239 = scalar_select %p238, %s20, 1
        %p240 = scmp.lt.s32.totalorder %s237, 1
        %s241 = scalar_select %p240, %s237, 1
        %s242 = smul.addr %s239, 6
        %s243 = sadd.s32 %s241, %s242
        %s244 = smul.addr %s243, 8
        %s245 = scalar_lea.vmem %s1, %s244
        %p246 = pneg %p77
        %p247 = pneg %p74
        %s248 = smul.u32 2, %s21
        %p249 = scmp.lt.s32.totalorder %s20, 1
        %s250 = scalar_select %p249, %s20, 1
        %p251 = scmp.lt.s32.totalorder %s248, 1
        %s252 = scalar_select %p251, %s248, 1
        %s253 = smul.addr %s250, 2
        %s254 = sadd.s32 %s252, %s253
        %s255 = smul.addr %s254, 4
        %s256 = scalar_lea.vmem %s2, %s255
        %p257 = pneg %p105
        %p258 = pneg %p102
        %p259 = pneg %p126
        %p260 = pneg %p123
        %p261 = pneg %p154
        %p262 = pneg %p151
        %s263 = smul.u32 2, %s21
        %p264 = scmp.lt.s32.totalorder %s20, 1
        %s265 = scalar_select %p264, %s20, 1
        %p266 = scmp.lt.s32.totalorder %s263, 1
        %s267 = scalar_select %p266, %s263, 1
        %s268 = smul.addr %s265, 2
        %s269 = sadd.s32 %s267, %s268
        %s270 = smul.addr %s269, 4
        %s271 = scalar_lea.vmem %s4, %s270
        %p272 = scmp.lt.s32.totalorder %s20, 1
        %s273 = scalar_select %p272, %s20, 1
        %s274 = smul.addr %s273, 2
        %s275 = smul.addr %s274, 8
        %s276 = scalar_lea.vmem %s0, %s275
        %s277 = smul.u32 2, %s21
        %p278 = scmp.lt.s32.totalorder %s20, 1
        %s279 = scalar_select %p278, %s20, 1
        %p280 = scmp.lt.s32.totalorder %s277, 1
        %s281 = scalar_select %p280, %s277, 1
        %s282 = smul.addr %s279, 6
        %s283 = sadd.s32 %s281, %s282
        %s284 = smul.addr %s283, 8
        %s285 = scalar_lea.vmem %s1, %s284
        %s286 = smul.u32 2, %s21
        %s287 = smul.u32 2, %s21
        %p288 = scmp.lt.s32.totalorder %s20, 1
        %s289 = scalar_select %p288, %s20, 1
        %p290 = scmp.lt.s32.totalorder %s287, 1
        %s291 = scalar_select %p290, %s287, 1
        %s292 = smul.addr %s289, 2
        %s293 = sadd.s32 %s291, %s292
        %s294 = smul.addr %s293, 4
        %s295 = scalar_lea.vmem %s2, %s294
        %s296 = smul.u32 2, %s21
        %s297 = smul.u32 2, %s21
        %p298 = scmp.lt.s32.totalorder %s20, 1
        %s299 = scalar_select %p298, %s20, 1
        %p300 = scmp.lt.s32.totalorder %s297, 1
        %s301 = scalar_select %p300, %s297, 1
        %s302 = smul.addr %s299, 2
        %s303 = sadd.s32 %s301, %s302
        %s304 = smul.addr %s303, 4
        %s305 = scalar_lea.vmem %s4, %s304
        %s306 = smul.u32 2, %s21
        %v307 = vld [vmem:[%s276] sm:$0xff]
        %v308 = vld [vmem:[%s276 + $0x8] sm:$0xf]
        %v309 = vld [vmem:[%s285] sm:$0xff]
        %v310 = vld [vmem:[%s285 + $0x8] sm:$0xff]
        %v311 = vld [vmem:[%s285 + $0x10] sm:$0xff]
        %v312 = vld [vmem:[%s285 + $0x18] sm:$0xff]
        %v313 = vld [vmem:[%s285 + $0x20] sm:$0xff]
        %v314 = vld [vmem:[%s285 + $0x28] sm:$0xff]
        %vm315 = vcmask 195584
        %v317 = vsel %vm315, %v307, 0
        %v320 = vsel %vm315, %v308, 0
        %322 = vmatprep.subr.mxu0 %v310
        %323 = vmatpush1.msra.mxu0 %v309
        %324 = vmatprep.subr.mxu0 %v312
        %325 = vmatpush1.msra.mxu0 %v311
        %326 = vmatprep.subr.mxu0 %v314
        %327 = vmatpush1.msra.mxu0 %v313
        %328 = vmatprep.subr.mxu0 0.0
        %329 = vmatpush1.msra.mxu0 0.0
        %330 = vmatprep.subr.mxu0 0.0
        %331 = vmatpush1.msra.mxu0 0.0
        %332 = vmatprep.subr.mxu0 0.0
        %333 = vmatpush1.msra.mxu0 0.0
        %334 = vmatprep.subr.mxu0 0.0
        %335 = vmatpush1.msra.mxu0 0.0
        %336 = vmatprep.subr.mxu0 0.0
        %337 = vmatpush1.msra.mxu0 0.0
        %338 = vmatprep.subr.mxu0 0.0
        %339 = vmatpush1.msra.mxu0 0.0
        %340 = vmatprep.subr.mxu0 0.0
        %341 = vmatpush1.msra.mxu0 0.0
        %342 = vmatprep.subr.mxu0 0.0
        %343 = vmatpush1.msra.mxu0 0.0
        %344 = vmatprep.subr.mxu0 0.0
        %345 = vmatpush1.msra.mxu0 0.0
        %346 = vmatprep.subr.mxu0 0.0
        %347 = vmatpush1.msra.mxu0 0.0
        %348 = vmatprep.subr.mxu0 0.0
        %349 = vmatpush1.msra.mxu0 0.0
        %350 = vmatprep.subr.mxu0 0.0
        %351 = vmatpush1.msra.mxu0 0.0
        %352 = vmatprep.subr.mxu0 0.0
        %353 = vmatpush1.msra.mxu0 0.0
        %354 = vmatprep.subr.mxu0 0.0
        %355 = vmatpush1.msra.mxu0 0.0
        %356 = vmatprep.subr.mxu0 0.0
        %357 = vmatpush1.msra.mxu0 0.0
        %358 = vmatprep.subr.mxu0 0.0
        %359 = vmatpush1.msra.mxu0 0.0
        %360 = vmatprep.subr.mxu0 0.0
        %361 = vmatpush1.msra.mxu0 0.0
        %362 = vmatprep.subr.mxu0 0.0
        %363 = vmatpush1.msra.mxu0 0.0
        %364 = vmatprep.subr.mxu0 0.0
        %365 = vmatpush1.msra.mxu0 0.0
        %366 = vmatprep.subr.mxu0 0.0
        %367 = vmatpush1.msra.mxu0 0.0
        %368 = vmatprep.subr.mxu0 0.0
        %369 = vmatpush1.msra.mxu0 0.0
        %370 = vmatprep.subr.mxu0 0.0
        %371 = vmatpush1.msra.mxu0 0.0
        %372 = vmatprep.subr.mxu0 0.0
        %373 = vmatpush1.msra.mxu0 0.0
        %374 = vmatprep.subr.mxu0 0.0
        %375 = vmatpush1.msra.mxu0 0.0
        %376 = vmatprep.subr.mxu0 0.0
        %377 = vmatpush1.msra.mxu0 0.0
        %378 = vmatprep.subr.mxu0 0.0
        %379 = vmatpush1.msra.mxu0 0.0
        %380 = vmatprep.subr.mxu0 0.0
        %381 = vmatpush1.msra.mxu0 0.0
        %382 = vmatprep.subr.mxu0 0.0
        %383 = vmatpush1.msra.mxu0 0.0
        %384 = vmatprep.subr.mxu0 0.0
        %385 = vmatpush1.msra.mxu0 0.0
        %386 = vmatprep.mubr.f32.mxu0 0.0
        %387 = vmatmul.mubr.f32.gmra.mrb[0].mxu0 %v317
        %v388 = vpop.f32.mrb[0].mxu0
        %v389 = vadd.f32 0.0, %v388
        %v390 = vpop.f32.mrb[0].mxu0
        %v391 = vadd.f32 0.0, %v390
        %392 = vmatprep.mubr.f32.mxu0 0.0
        %393 = vmatmul.mubr.f32.gmra.mrb[0].mxu0 %v320
        %v394 = vpop.f32.mrb[0].mxu0
        %v395 = vadd.f32 0.0, %v394
        %v396 = vpop.f32.mrb[0].mxu0
        %v397 = vadd.f32 0.0, %v396
        %398 = vdwg.mxu0
        %v399 = vld [vmem:[%s295] sm:$0x77]
        %v401 = vlaneseq
        %v402 = vshrl.u32 %v401, 7
        %v403 = vsub.s32 0, %v402
        %v404 = vrot.slane %v399, %v403
        %v405 = vlaneseq
        %v406 = vshrl.u32 %v405, 7
        %v407 = vsub.s32 4, %v406
        %v408 = vrot.slane %v399, %v407
        %v411 = vmul.f32 %v389, %v404
        %v412 = vmul.f32 %v391, %v408
        %v413 = vlaneseq
        %v414 = vshrl.u32 %v413, 7
        %v415 = vsub.s32 1, %v414
        %v416 = vrot.slane %v399, %v415
        %v417 = vlaneseq
        %v418 = vshrl.u32 %v417, 7
        %v419 = vsub.s32 5, %v418
        %v420 = vrot.slane %v399, %v419
        %v423 = vmul.f32 %v389, %v416
        %v424 = vmul.f32 %v391, %v420
        %v427 = vrot.slane %v423, 1
        %v428 = vrot.slane %v424, 1
        %v431 = vadd.f32 %v411, %v427
        %v432 = vadd.f32 %v412, %v428
        %v433 = vlaneseq
        %v434 = vshrl.u32 %v433, 7
        %v435 = vsub.s32 2, %v434
        %v436 = vrot.slane %v399, %v435
        %v437 = vlaneseq
        %v438 = vshrl.u32 %v437, 7
        %v439 = vsub.s32 6, %v438
        %v440 = vrot.slane %v399, %v439
        %v443 = vmul.f32 %v389, %v436
        %v444 = vmul.f32 %v391, %v440
        %v447 = vrot.slane %v443, 2
        %v448 = vrot.slane %v444, 2
        %v451 = vadd.f32 %v431, %v447
        %v452 = vadd.f32 %v432, %v448
        %v455 = vrot.slane %v389, 3
        %v456 = vrot.slane %v391, 3
        %v459 = vadd.f32 %v451, %v455
        %v460 = vadd.f32 %v452, %v456
        %s461 = smul.u32 %s20, 128
        %s462 = sld [smem:[#allocation2 + %s461]]
        %v463 = vstv %s462
        %v464 = vadd.f32 %v459, %v463
        %v465 = vadd.f32 %v460, %v463
        %v468 = vcombine.low %v464, %v465
        %v470 = vunpack.c.l.s4 1966171168
        %v471 = vunpack.c.0.s8 %v470
        %v472 = vlaneseq
        %v473 = vshrl.u32 %v472, 7
        %v474 = vsub.s32 %v471, %v473
        %v475 = vrot.slane %v468, %v474
        %v477 = vunpack.c.l.s4 1966171168
        %v478 = vunpack.c.0.s8 %v477
        %v479 = vlaneseq
        %v480 = vshrl.u32 %v479, 7
        %v481 = vsub.s32 %v478, %v480
        %v482 = vrot.slane %v475, %v481
        %v484 = vlaneseq
        %vm485 = vcmp.ge.s32.totalorder %v484, 0
        %vm486 = vcmp.lt.s32.totalorder %v484, 256
        %vm487 = vmand %vm485, %vm486
        %488 = vst.msk [vmem:[%s305] ss:$4 sm:$0x3] %vm487, %v482
        %s489 = sadd.s32 %s461, 1
        %s490 = sld [smem:[#allocation2 + %s489]]
        %v491 = vstv %s490
        %v492 = vadd.f32 %v459, %v491
        %v493 = vadd.f32 %v460, %v491
        %v496 = vcombine.high %v492, %v493
        %v498 = vunpack.c.l.s4 1966171168
        %v499 = vunpack.c.0.s8 %v498
        %v500 = vlaneseq
        %v501 = vshrl.u32 %v500, 7
        %v502 = vsub.s32 %v499, %v501
        %v503 = vrot.slane %v496, %v502
        %v505 = vunpack.c.l.s4 1966171168
        %v506 = vunpack.c.0.s8 %v505
        %v507 = vlaneseq
        %v508 = vshrl.u32 %v507, 7
        %v509 = vsub.s32 %v506, %v508
        %v510 = vrot.slane %v503, %v509
        %s512 = scalar_lea.vmem %s305, 1
        %513 = vst.msk [vmem:[%s512] ss:$4 sm:$0x3] %vm487, %v510
        %v514 = vmul.f32 %v395, %v404
        %v515 = vmul.f32 %v397, %v408
        %v516 = vmul.f32 %v395, %v416
        %v517 = vmul.f32 %v397, %v420
        %v520 = vrot.slane %v516, 1
        %v521 = vrot.slane %v517, 1
        %v524 = vadd.f32 %v514, %v520
        %v525 = vadd.f32 %v515, %v521
        %v526 = vmul.f32 %v395, %v436
        %v527 = vmul.f32 %v397, %v440
        %v530 = vrot.slane %v526, 2
        %v531 = vrot.slane %v527, 2
        %v534 = vadd.f32 %v524, %v530
        %v535 = vadd.f32 %v525, %v531
        %v538 = vrot.slane %v395, 3
        %v539 = vrot.slane %v397, 3
        %v542 = vadd.f32 %v534, %v538
        %v543 = vadd.f32 %v535, %v539
        %s544 = sadd.s32 %s461, 2
        %s545 = sld [smem:[#allocation2 + %s544]]
        %v546 = vstv %s545
        %v547 = vadd.f32 %v542, %v546
        %v548 = vadd.f32 %v543, %v546
        %v551 = vcombine.low %v547, %v548
        %v553 = vunpack.c.l.s4 1966171168
        %v554 = vunpack.c.0.s8 %v553
        %v555 = vlaneseq
        %v556 = vshrl.u32 %v555, 7
        %v557 = vsub.s32 %v554, %v556
        %v558 = vrot.slane %v551, %v557
        %v560 = vunpack.c.l.s4 1966171168
        %v561 = vunpack.c.0.s8 %v560
        %v562 = vlaneseq
        %v563 = vshrl.u32 %v562, 7
        %v564 = vsub.s32 %v561, %v563
        %v565 = vrot.slane %v558, %v564
        %s567 = scalar_lea.vmem %s305, 2
        %568 = vst.msk [vmem:[%s567] ss:$4 sm:$0x3] %vm487, %v565
        %s569 = smul.u32 2, %s21
        %p570 = scmp.lt.s32.totalorder %s20, 1
        %s571 = scalar_select %p570, %s20, 1
        %p572 = scmp.lt.s32.totalorder %s569, 1
        %s573 = scalar_select %p572, %s569, 1
        %s574 = smul.addr %s571, 2
        %s575 = sadd.s32 %s573, %s574
        %s576 = smul.addr %s575, 4
        %s577 = scalar_lea.vmem %s4, %s576
        // Predicated region
        $region41: #{forward.1} parent=35 // pred_check
          %p578 = pneg %p151
        $region42: #{forward.1} parent=35 // pred_check_branch
          %580 = sbr.rel (%p578) target = $region44
        $region43: #{forward.1} parent=35 // pred_region
          %s581 = smul.u32 2, %s21
        $region44: #{forward.1} parent=35 // pred_fallthru
          _
      $region36: #{forward.1} parent=5 // pred_fallthru
        _
      %p582 = scmp.le.s32.totalorder 2, %s11
      // Predicated region
      $region45: #{forward.1} parent=5 // pred_check
        %p583 = pneg %p582
      $region46: #{forward.1} parent=5 // pred_check_branch
        %585 = sbr.rel (%p583) target = $region48
      $region47: #{forward.1} parent=5 // pred_region
        %s586 = ssub.s32 %s11, 2
        // Predicated region
        $region49: #{forward.1} parent=47 // pred_check
          %p587 = pneg %p157
        $region50: #{forward.1} parent=47 // pred_check_branch
          %589 = sbr.rel (%p587) target = $region52
        $region51: #{forward.1} parent=47 // pred_region
          %s590 = smul.u32 2, %s23
          %p591 = scmp.lt.s32.totalorder %s22, 1
          %s592 = scalar_select %p591, %s22, 1
          %p593 = scmp.lt.s32.totalorder %s590, 1
          %s594 = scalar_select %p593, %s590, 1
          %s595 = smul.addr %s592, 2
          %s596 = sadd.s32 %s594, %s595
          %s597 = smul.addr %s596, 4
          %s598 = scalar_lea.vmem %s4, %s597
        $region52: #{forward.1} parent=47 // pred_fallthru
          _
      $region48: #{forward.1} parent=5 // pred_fallthru
        _
    $region6: #{forward.1} parent=1 // loop_footer
      %s15 = sadd.s32 1, %s11
    $region7: #{forward.1} parent=1 // loop_footer_branch
      %10 = sbr.rel target = $region3
    $region8: #{forward.1} parent=1 // loop_exit
      _
    %599 = vsyncpa [#allocation3], 1
    %s600 = scalar_lea.sflag [#allocation3], 1
    %601 = vsyncpa %s600, 1

</llo_original>
